<compile_context>
chip_gen: v6e
topology: v6e:2x2x1
jax: 0.10.0
libtpu: 0.0.40
codegen_flags: <defaults>
</compile_context>

<pallas_src>
import functools

import jax
import jax.numpy as jnp
from jax import lax
from jax.experimental import pallas as pl
from jax.experimental.pallas import tpu as pltpu


def _device_vmem_bytes():
    """Physical VMEM capacity; falls back to the smallest (v7x, 64 MiB)."""
    try:
        return int(pltpu.get_tpu_info().vmem_capacity_bytes)
    except Exception:
        return 64 << 20


def _celoss_kernel(pred_ref, tgt_ref, loss_ref, *, n_total):
    """One (TILE_N, C) row tile -> per-row cross-entropy losses.

    pred_ref: (TILE_N, C) logits (any float dtype, upcast to f32 in-kernel)
    tgt_ref : (TILE_N, 1) int32 class indices
    loss_ref: (TILE_N, 1) f32 per-row -log_softmax(pred)[r, target[r]]
    """
    i = pl.program_id(0)

    x = pred_ref[...].astype(jnp.float32)  # (tn, C)
    tn, c = x.shape

    # Numerically-stable row-wise logsumexp on the raw logits.
    m = jnp.max(x, axis=1, keepdims=True)                          # (tn, 1)
    lse = jnp.log(jnp.sum(jnp.exp(x - m), axis=1, keepdims=True))  # (tn, 1)

    # Picked logit x[r, target[r]] via one-hot lane mask (no dynamic gather).
    tgt = tgt_ref[...]                                             # (tn, 1) int32
    lane = lax.broadcasted_iota(jnp.int32, (tn, c), 1)
    picked = jnp.sum(jnp.where(lane == tgt, x, 0.0), axis=1, keepdims=True)

    # -log_softmax(x)[r, target[r]] per row, no (N, C) log_softmax materialized.
    per_row = (m + lse) - picked                                   # (tn, 1)

    # Mask padded rows of a remainder tile. Keep this a where-select: garbage
    # rows can hold Inf/NaN and a multiply-mask would propagate them.
    row = lax.broadcasted_iota(jnp.int32, (tn, 1), 0) + i * tn
    per_row = jnp.where(row < n_total, per_row, 0.0)

    loss_ref[...] = per_row


def ce_loss(pred, target, *, tile_n=None):
    """pred: (N, C) float logits, target: (N,) integer class indices.

    Returns scalar f32:  NLLLoss(log_softmax(pred), target, reduction='sum') / N
    """
    n, c = pred.shape
    tgt2d = target.astype(jnp.int32).reshape(n, 1)

    itemsize = jnp.dtype(pred.dtype).itemsize
    # Sublane multiple of the logits dtype: 8 (f32), 16 (bf16/f16), 32 (int8/fp8).
    sub = max(8, 32 // max(1, itemsize))

    vmem_cap = _device_vmem_bytes()

    if tile_n is None:
        # Target ~4 MiB per pred buffer (double-buffered by BlockSpec), but keep
        # the whole per-step working set inside ~half of physical VMEM. The
        # working set per element is roughly: 2 * itemsize (double-buffered DMA
        # of the native-dtype block) + ~20 B of f32/i32 temporaries (f32 upcast,
        # exp(x-m), lane iota, one-hot select, compare mask).
        target_block_bytes = 4 << 20
        bytes_per_row_dma = c * itemsize
        bytes_per_row_work = c * (2 * itemsize + 20)
        tile_n = max(sub, target_block_bytes // max(1, bytes_per_row_dma))
        tile_feasible = max(sub, (vmem_cap // 2) // max(1, bytes_per_row_work))
        tile_n = min(tile_n, tile_feasible)

    n_pad = ((n + sub - 1) // sub) * sub
    tile_n = max(sub, (min(tile_n, n_pad) // sub) * sub)

    grid = (pl.cdiv(n, tile_n),)
    kernel = functools.partial(_celoss_kernel, n_total=n)

    # ~75% of physical VMEM: 48 MiB on v7x, 96 MiB on v5e/v6e.
    vmem_limit = int(vmem_cap * 3 // 4)

    per_row = pl.pallas_call(
        kernel,
        out_shape=jax.ShapeDtypeStruct((n, 1), jnp.float32),
        grid_spec=pltpu.PrefetchScalarGridSpec(
            num_scalar_prefetch=0,
            grid=grid,
            in_specs=[
                pl.BlockSpec((tile_n, c), lambda i: (i, 0)),
                pl.BlockSpec((tile_n, 1), lambda i: (i, 0)),
            ],
            out_specs=pl.BlockSpec((tile_n, 1), lambda i: (i, 0)),
        ),
        compiler_params=pltpu.CompilerParams(
            # No cross-step state -> row-tile axis is fully parallel (megacore).
            dimension_semantics=("parallel",),
            vmem_limit_bytes=vmem_limit,
        ),
    )(pred, tgt2d)

    # Final tiny reduction + mean in plain JAX (N floats, negligible traffic).
    return jnp.sum(per_row) / jnp.float32(n)


if __name__ == "__main__":
    key = jax.random.PRNGKey(0)
    k1, k2 = jax.random.split(key)

    # Small, lane-dense shapes: batch=64, num_classes=128 (auto tile -> 1 step).
    N, C = 64, 128
    pred = jax.random.normal(k1, (N, C), dtype=jnp.float32)
    target = jax.random.randint(k2, (N,), 0, C, dtype=jnp.int32)

    loss = jax.block_until_ready(ce_loss(pred, target))
    logp_ref = jax.nn.log_softmax(pred, axis=1)
    ref = -jnp.sum(logp_ref[jnp.arange(N), target]) / N
    assert jnp.allclose(loss, ref, atol=1e-5, rtol=1e-5), (loss, ref)

    # Multi-step grid + remainder tile: N=50 with tile_n=16 (4 grid steps).
    N2 = 50
    pred2 = jax.random.normal(k1, (N2, C), dtype=jnp.float32)
    target2 = jax.random.randint(k2, (N2,), 0, C, dtype=jnp.int32)
    loss2 = jax.block_until_ready(ce_loss(pred2, target2, tile_n=16))
    logp2 = jax.nn.log_softmax(pred2, axis=1)
    ref2 = -jnp.sum(logp2[jnp.arange(N2), target2]) / N2
    assert jnp.allclose(loss2, ref2, atol=1e-5, rtol=1e-5), (loss2, ref2)

    print("KERNEL_OK")
</pallas_src>

<mosaic_0001>
module attributes {stable_mosaic.version = 11 : i64} {
  func.func @_celoss_kernel(%arg0: i32, %arg1: memref<64x128xf32, #tpu.memory_space<vmem>>, %arg2: memref<64x1xi32, #tpu.memory_space<vmem>>, %arg3: memref<64x1xf32, #tpu.memory_space<vmem>>) attributes {dimension_semantics = [#tpu.dimension_semantics<parallel>], iteration_bounds = array<i64: 1>, scalar_prefetch = 0 : i64, scratch_operands = 0 : i64, tpu.core_type = #tpu.core_type<tc>, window_params = [{transform_indices = @transform_0, window_bounds = array<i64: 64, 128>}, {transform_indices = @transform_1, window_bounds = array<i64: 64, 1>}, {transform_indices = @transform_2, window_bounds = array<i64: 64, 1>}]} {
    %c0 = arith.constant 0 : index
    %c0_0 = arith.constant 0 : index
    %0 = vector.load %arg1[%c0, %c0_0] : memref<64x128xf32, #tpu.memory_space<vmem>>, vector<64x128xf32>
    %cst = arith.constant dense<0xFF800000> : vector<64xf32>
    %1 = vector.multi_reduction <maximumf>, %0, %cst [1] : vector<64x128xf32> to vector<64xf32>
    %2 = vector.shape_cast %1 : vector<64xf32> to vector<64x1xf32>
    %3 = vector.broadcast %2 : vector<64x1xf32> to vector<64x128xf32>
    %4 = arith.subf %0, %3 : vector<64x128xf32>
    %5 = math.exp %4 : vector<64x128xf32>
    %cst_1 = arith.constant dense<0.000000e+00> : vector<64xf32>
    %6 = vector.multi_reduction <add>, %5, %cst_1 [1] : vector<64x128xf32> to vector<64xf32>
    %7 = vector.shape_cast %6 : vector<64xf32> to vector<64x1xf32>
    %8 = math.log %7 : vector<64x1xf32>
    %c0_2 = arith.constant 0 : index
    %c0_3 = arith.constant 0 : index
    %9 = vector.load %arg2[%c0_2, %c0_3] : memref<64x1xi32, #tpu.memory_space<vmem>>, vector<64x1xi32>
    %10 = tpu.iota {dimensions = array<i32: 1>} : vector<64x128xi32>
    %11 = vector.broadcast %9 : vector<64x1xi32> to vector<64x128xi32>
    %12 = arith.cmpi eq, %10, %11 : vector<64x128xi32>
    %cst_4 = arith.constant 0.000000e+00 : f32
    %13 = vector.broadcast %cst_4 : f32 to vector<64x128xf32>
    %14 = arith.select %12, %0, %13 : vector<64x128xi1>, vector<64x128xf32>
    %cst_5 = arith.constant dense<0.000000e+00> : vector<64xf32>
    %15 = vector.multi_reduction <add>, %14, %cst_5 [1] : vector<64x128xf32> to vector<64xf32>
    %16 = vector.shape_cast %15 : vector<64xf32> to vector<64x1xf32>
    %17 = arith.addf %2, %8 : vector<64x1xf32>
    %18 = arith.subf %17, %16 : vector<64x1xf32>
    %19 = tpu.iota {dimensions = array<i32: 0>} : vector<64x1xi32>
    %c64_i32 = arith.constant 64 : i32
    %20 = arith.muli %arg0, %c64_i32 : i32
    %21 = vector.broadcast %20 : i32 to vector<64x1xi32>
    %22 = arith.addi %19, %21 : vector<64x1xi32>
    %c64_i32_6 = arith.constant 64 : i32
    %23 = vector.broadcast %c64_i32_6 : i32 to vector<64x1xi32>
    %24 = arith.cmpi slt, %22, %23 : vector<64x1xi32>
    %cst_7 = arith.constant 0.000000e+00 : f32
    %25 = vector.broadcast %cst_7 : f32 to vector<64x1xf32>
    %26 = arith.select %24, %18, %25 : vector<64x1xi1>, vector<64x1xf32>
    %c0_8 = arith.constant 0 : index
    %c0_9 = arith.constant 0 : index
    %27 = vector.load %arg3[%c0_8, %c0_9] : memref<64x1xf32, #tpu.memory_space<vmem>>, vector<64x1xf32>
    tpu.vector_store %arg3[%c0_8, %c0_9], %26 {strides = array<i32>} : memref<64x1xf32, #tpu.memory_space<vmem>>, vector<64x1xf32>,
    return
  }
  func.func @transform_0(%arg0: i32) -> (i32, i32) {
    %c0_i32 = arith.constant 0 : i32
    %c0_i32_0 = arith.constant 0 : i32
    return %arg0, %c0_i32 : i32, i32
  }
  func.func @transform_1(%arg0: i32) -> (i32, i32) {
    %c0_i32 = arith.constant 0 : i32
    %c0_i32_0 = arith.constant 0 : i32
    return %arg0, %c0_i32 : i32, i32
  }
  func.func @transform_2(%arg0: i32) -> (i32, i32) {
    %c0_i32 = arith.constant 0 : i32
    %c0_i32_0 = arith.constant 0 : i32
    return %arg0, %c0_i32 : i32, i32
  }
}

</mosaic_0001>

<llo_original>
// kernel: tpu_custom_call.1
$region0: #{tpu_custom_call.1}
  #allocation0 [shape = 'u32[]', space=smem, size = 0x4, offset = 0x4, fixed_abs, tag = 'smem constant byte address 0x4 - core index']
  #allocation1 [shape = 'u32[144,128]{1,0:T(1,128)}', space=vmem, size = 0x12000, scoped, tag = 'internal scratch']
  %s0 = inlined_call_operand.vmem [shape: f32[64,128], index: 0, kind: input, shape index: {}]
  %s1 = inlined_call_operand.vmem [shape: s32[64,1], index: 1, kind: input, shape index: {}]
  %s2 = inlined_call_operand.vmem [shape: f32[64,1], index: 2, kind: output, shape index: {}]
  %s3 = sld [smem:[#allocation0]]
  $region18: #{tpu_custom_call.1} parent=0
    _
  %s5 = ssub.s32 1, %s3
  %s6 = scalar_select 0, %s5, %s3
  // Predicated region
  $region2: #{tpu_custom_call.1} parent=0 // pred_check
    _
  $region3: #{tpu_custom_call.1} parent=0 // pred_check_branch
    %8 = sbr.rel (0) target = $region5
  $region4: #{tpu_custom_call.1} parent=0 // pred_region
    _
  $region5: #{tpu_custom_call.1} parent=0 // pred_fallthru
    _
  // Predicated region
  $region6: #{tpu_custom_call.1} parent=0 // pred_check
    _
  $region7: #{tpu_custom_call.1} parent=0 // pred_check_branch
    %10 = sbr.rel (0) target = $region9
  $region8: #{tpu_custom_call.1} parent=0 // pred_region
    _
  $region9: #{tpu_custom_call.1} parent=0 // pred_fallthru
    _
  %v11 = vld [vmem:[%s0] sm:$0xff]
  %v12 = vld [vmem:[%s0 + $0x8] sm:$0xff]
  %v13 = vld [vmem:[%s0 + $0x10] sm:$0xff]
  %v14 = vld [vmem:[%s0 + $0x18] sm:$0xff]
  %v15 = vld [vmem:[%s0 + $0x20] sm:$0xff]
  %v16 = vld [vmem:[%s0 + $0x28] sm:$0xff]
  %v17 = vld [vmem:[%s0 + $0x30] sm:$0xff]
  %v18 = vld [vmem:[%s0 + $0x38] sm:$0xff]
  %19 = vmax.xlane.f32.xlu0 %v11
  %v20 = vpop.xlane.xlu0 %19
  %21 = vmax.xlane.f32.xlu0 %v12
  %v22 = vpop.xlane.xlu0 %21
  %23 = vmax.xlane.f32.xlu0 %v13
  %v24 = vpop.xlane.xlu0 %23
  %25 = vmax.xlane.f32.xlu0 %v14
  %v26 = vpop.xlane.xlu0 %25
  %27 = vmax.xlane.f32.xlu0 %v15
  %v28 = vpop.xlane.xlu0 %27
  %29 = vmax.xlane.f32.xlu0 %v16
  %v30 = vpop.xlane.xlu0 %29
  %31 = vmax.xlane.f32.xlu0 %v17
  %v32 = vpop.xlane.xlu0 %31
  %33 = vmax.xlane.f32.xlu0 %v18
  %v34 = vpop.xlane.xlu0 %33
  %v35 = vsub.f32 %v11, %v20
  %v36 = vsub.f32 %v12, %v22
  %v37 = vsub.f32 %v13, %v24
  %v38 = vsub.f32 %v14, %v26
  %v39 = vsub.f32 %v15, %v28
  %v40 = vsub.f32 %v16, %v30
  %v41 = vsub.f32 %v17, %v32
  %v42 = vsub.f32 %v18, %v34
  %v43 = vmul.f32 %v35, 1.442695
  %v44 = vpow.pop %v43
  %v45 = vmul.f32 %v36, 1.442695
  %v46 = vpow.pop %v45
  %v47 = vmul.f32 %v37, 1.442695
  %v48 = vpow.pop %v47
  %v49 = vmul.f32 %v38, 1.442695
  %v50 = vpow.pop %v49
  %v51 = vmul.f32 %v39, 1.442695
  %v52 = vpow.pop %v51
  %v53 = vmul.f32 %v40, 1.442695
  %v54 = vpow.pop %v53
  %v55 = vmul.f32 %v41, 1.442695
  %v56 = vpow.pop %v55
  %v57 = vmul.f32 %v42, 1.442695
  %v58 = vpow.pop %v57
  %59 = vadd.xlane.f32.xlu0 %v44
  %v60 = vpop.xlane.xlu0 %59
  %61 = vadd.xlane.f32.xlu0 %v46
  %v62 = vpop.xlane.xlu0 %61
  %63 = vadd.xlane.f32.xlu0 %v48
  %v64 = vpop.xlane.xlu0 %63
  %65 = vadd.xlane.f32.xlu0 %v50
  %v66 = vpop.xlane.xlu0 %65
  %67 = vadd.xlane.f32.xlu0 %v52
  %v68 = vpop.xlane.xlu0 %67
  %69 = vadd.xlane.f32.xlu0 %v54
  %v70 = vpop.xlane.xlu0 %69
  %71 = vadd.xlane.f32.xlu0 %v56
  %v72 = vpop.xlane.xlu0 %71
  %73 = vadd.xlane.f32.xlu0 %v58
  %v74 = vpop.xlane.xlu0 %73
  %v75 = vlog2.pop %v60
  %v76 = vmul.f32 %v75, 0.6931472
  %v77 = vlog2.pop %v62
  %v78 = vmul.f32 %v77, 0.6931472
  %v79 = vlog2.pop %v64
  %v80 = vmul.f32 %v79, 0.6931472
  %v81 = vlog2.pop %v66
  %v82 = vmul.f32 %v81, 0.6931472
  %v83 = vlog2.pop %v68
  %v84 = vmul.f32 %v83, 0.6931472
  %v85 = vlog2.pop %v70
  %v86 = vmul.f32 %v85, 0.6931472
  %v87 = vlog2.pop %v72
  %v88 = vmul.f32 %v87, 0.6931472
  %v89 = vlog2.pop %v74
  %v90 = vmul.f32 %v89, 0.6931472
  %v91 = vld [vmem:[%s1] sm:$0xff]
  %v92 = vld [vmem:[%s1 + $0x8] sm:$0xff]
  %v93 = vld [vmem:[%s1 + $0x10] sm:$0xff]
  %v94 = vld [vmem:[%s1 + $0x18] sm:$0xff]
  %v95 = vld [vmem:[%s1 + $0x20] sm:$0xff]
  %v96 = vld [vmem:[%s1 + $0x28] sm:$0xff]
  %v97 = vld [vmem:[%s1 + $0x30] sm:$0xff]
  %v98 = vld [vmem:[%s1 + $0x38] sm:$0xff]
  %v99 = vlaneseq
  %v100 = vand.u32 %v99, 127
  %101 = vset.pattern.permute.xlu0 0
  %102 = vperm.xlu0 %101, %v91
  %v103 = vpop.permute.xlu0 %102
  %104 = vset.pattern.permute.xlu0 0
  %105 = vperm.xlu0 %104, %v92
  %v106 = vpop.permute.xlu0 %105
  %107 = vset.pattern.permute.xlu0 0
  %108 = vperm.xlu0 %107, %v93
  %v109 = vpop.permute.xlu0 %108
  %110 = vset.pattern.permute.xlu0 0
  %111 = vperm.xlu0 %110, %v94
  %v112 = vpop.permute.xlu0 %111
  %113 = vset.pattern.permute.xlu0 0
  %114 = vperm.xlu0 %113, %v95
  %v115 = vpop.permute.xlu0 %114
  %116 = vset.pattern.permute.xlu0 0
  %117 = vperm.xlu0 %116, %v96
  %v118 = vpop.permute.xlu0 %117
  %119 = vset.pattern.permute.xlu0 0
  %120 = vperm.xlu0 %119, %v97
  %v121 = vpop.permute.xlu0 %120
  %122 = vset.pattern.permute.xlu0 0
  %123 = vperm.xlu0 %122, %v98
  %v124 = vpop.permute.xlu0 %123
  %vm125 = vcmp.eq.s32.totalorder %v100, %v103
  %vm126 = vcmp.eq.s32.totalorder %v100, %v106
  %vm127 = vcmp.eq.s32.totalorder %v100, %v109
  %vm128 = vcmp.eq.s32.totalorder %v100, %v112
  %vm129 = vcmp.eq.s32.totalorder %v100, %v115
  %vm130 = vcmp.eq.s32.totalorder %v100, %v118
  %vm131 = vcmp.eq.s32.totalorder %v100, %v121
  %vm132 = vcmp.eq.s32.totalorder %v100, %v124
  %v133 = vsel %vm125, %v11, 0.0
  %v134 = vsel %vm126, %v12, 0.0
  %v135 = vsel %vm127, %v13, 0.0
  %v136 = vsel %vm128, %v14, 0.0
  %v137 = vsel %vm129, %v15, 0.0
  %v138 = vsel %vm130, %v16, 0.0
  %v139 = vsel %vm131, %v17, 0.0
  %v140 = vsel %vm132, %v18, 0.0
  %141 = vadd.xlane.f32.xlu0 %v133
  %v142 = vpop.xlane.xlu0 %141
  %143 = vadd.xlane.f32.xlu0 %v134
  %v144 = vpop.xlane.xlu0 %143
  %145 = vadd.xlane.f32.xlu0 %v135
  %v146 = vpop.xlane.xlu0 %145
  %147 = vadd.xlane.f32.xlu0 %v136
  %v148 = vpop.xlane.xlu0 %147
  %149 = vadd.xlane.f32.xlu0 %v137
  %v150 = vpop.xlane.xlu0 %149
  %151 = vadd.xlane.f32.xlu0 %v138
  %v152 = vpop.xlane.xlu0 %151
  %153 = vadd.xlane.f32.xlu0 %v139
  %v154 = vpop.xlane.xlu0 %153
  %155 = vadd.xlane.f32.xlu0 %v140
  %v156 = vpop.xlane.xlu0 %155
  %v157 = vadd.f32 %v20, %v76
  %v158 = vadd.f32 %v22, %v78
  %v159 = vadd.f32 %v24, %v80
  %v160 = vadd.f32 %v26, %v82
  %v161 = vadd.f32 %v28, %v84
  %v162 = vadd.f32 %v30, %v86
  %v163 = vadd.f32 %v32, %v88
  %v164 = vadd.f32 %v34, %v90
  %v165 = vsub.f32 %v157, %v142
  %v166 = vsub.f32 %v158, %v144
  %v167 = vsub.f32 %v159, %v146
  %v168 = vsub.f32 %v160, %v148
  %v169 = vsub.f32 %v161, %v150
  %v170 = vsub.f32 %v162, %v152
  %v171 = vsub.f32 %v163, %v154
  %v172 = vsub.f32 %v164, %v156
  %v173 = vlaneseq
  %v174 = vshrl.u32 %v173, 7
  %v175 = vadd.s32 %v174, 8
  %v176 = vadd.s32 %v174, 16
  %v177 = vadd.s32 %v174, 24
  %v178 = vadd.s32 %v174, 32
  %v179 = vadd.s32 %v174, 40
  %v180 = vadd.s32 %v174, 48
  %v181 = vadd.s32 %v174, 56
  %s182 = smul.u32 0, 64
  %v183 = vstv %s182
  %v184 = vadd.s32 %v174, %v183
  %v185 = vadd.s32 %v175, %v183
  %v186 = vadd.s32 %v176, %v183
  %v187 = vadd.s32 %v177, %v183
  %v188 = vadd.s32 %v178, %v183
  %v189 = vadd.s32 %v179, %v183
  %v190 = vadd.s32 %v180, %v183
  %v191 = vadd.s32 %v181, %v183
  %vm192 = vcmp.lt.s32.totalorder %v184, 64
  %vm193 = vcmp.lt.s32.totalorder %v185, 64
  %vm194 = vcmp.lt.s32.totalorder %v186, 64
  %vm195 = vcmp.lt.s32.totalorder %v187, 64
  %vm196 = vcmp.lt.s32.totalorder %v188, 64
  %vm197 = vcmp.lt.s32.totalorder %v189, 64
  %vm198 = vcmp.lt.s32.totalorder %v190, 64
  %vm199 = vcmp.lt.s32.totalorder %v191, 64
  %v200 = vsel %vm192, %v165, 0.0
  %v201 = vsel %vm193, %v166, 0.0
  %v202 = vsel %vm194, %v167, 0.0
  %v203 = vsel %vm195, %v168, 0.0
  %v204 = vsel %vm196, %v169, 0.0
  %v205 = vsel %vm197, %v170, 0.0
  %v206 = vsel %vm198, %v171, 0.0
  %v207 = vsel %vm199, %v172, 0.0
  %vm208 = vcmask 7168
  %209 = vst.msk [vmem:[%s2] sm:$0xff] %vm208, %v200
  %210 = vst.msk [vmem:[%s2 + $0x8] sm:$0xff] %vm208, %v201
  %211 = vst.msk [vmem:[%s2 + $0x10] sm:$0xff] %vm208, %v202
  %212 = vst.msk [vmem:[%s2 + $0x18] sm:$0xff] %vm208, %v203
  %213 = vst.msk [vmem:[%s2 + $0x20] sm:$0xff] %vm208, %v204
  %214 = vst.msk [vmem:[%s2 + $0x28] sm:$0xff] %vm208, %v205
  %215 = vst.msk [vmem:[%s2 + $0x30] sm:$0xff] %vm208, %v206
  %216 = vst.msk [vmem:[%s2 + $0x38] sm:$0xff] %vm208, %v207
  // Predicated region
  $region10: #{tpu_custom_call.1} parent=0 // pred_check
    _
  $region11: #{tpu_custom_call.1} parent=0 // pred_check_branch
    %218 = sbr.rel (0) target = $region13
  $region12: #{tpu_custom_call.1} parent=0 // pred_region
    _
  $region13: #{tpu_custom_call.1} parent=0 // pred_fallthru
    _
  // Predicated region
  $region14: #{tpu_custom_call.1} parent=0 // pred_check
    _
  $region15: #{tpu_custom_call.1} parent=0 // pred_check_branch
    %220 = sbr.rel (0) target = $region17
  $region16: #{tpu_custom_call.1} parent=0 // pred_region
    _
  $region17: #{tpu_custom_call.1} parent=0 // pred_fallthru
    _

</llo_original>
